<compile_context>
chip_gen: v6e
topology: v6e:2x2x1
jax: 0.10.0
libtpu: 0.0.40
codegen_flags: <defaults>
</compile_context>

<pallas_src>
import functools

import jax
import jax.numpy as jnp
from jax.experimental import pallas as pl
from jax.experimental.pallas import tpu as pltpu


def _round_up(v, m):
    return (v + m - 1) // m * m


# ---------------------------------------------------------------------------
# Hardware / feature detection (trace-time glue, not hot path)
# ---------------------------------------------------------------------------

_HAS_BUFFERED = hasattr(pl, "Buffered")
_BUFFERED_OK = [True]  # flipped off if the installed Pallas rejects Buffered specs


def _block_spec(shape, index_map, buffers=None):
    """BlockSpec with optional explicit buffer count (falls back gracefully)."""
    if buffers is not None and _HAS_BUFFERED:
        try:
            return pl.BlockSpec(shape, index_map, pipeline_mode=pl.Buffered(buffers))
        except (TypeError, ValueError):
            pass
    return pl.BlockSpec(shape, index_map)


def _device_kind():
    try:
        return jax.devices()[0].device_kind.lower()
    except Exception:
        return ""


def _vmem_capacity_bytes(kind):
    try:
        cap = int(pltpu.get_tpu_info().vmem_capacity_bytes)
        if cap > 0:
            return cap
    except Exception:
        pass
    if "v7" in kind:
        return 64 << 20  # v7x: 64 MiB per TensorCore
    return 128 << 20     # v5e / v6e


def _vmem_limit(tt, tn, dim, vmem_cap):
    """Scoped-VMEM budget for the chosen tiles, with headroom for Mosaic scratch."""
    bf16 = 2
    blocks = 2 * bf16 * (
        tt * dim          # x tile (worst case: double buffered)
        + dim * 2 * tn    # fused w1|w3 slab (double buffered)
        + tn * dim        # w2 slab (double buffered)
        + tt * dim        # output tile (worst case: double buffered)
    )
    scratch = 4 * tt * dim + 4 * tt * 2 * tn * 3  # f32 accumulator + intermediates
    want = int(1.3 * (blocks + scratch)) + (2 << 20)
    cap = vmem_cap - (8 << 20)                    # leave headroom (≤56 MiB on v7x)
    return max(16 << 20, min(want, cap))


# ---------------------------------------------------------------------------
# Kernel
# ---------------------------------------------------------------------------

def _expert_kernel(x_ref, w13_ref, w2_ref, o_ref, acc_ref):
    """One (token_tile, inter_slab) grid step of the SwiGLU expert.

    x_ref   : (tt, dim)    bf16  token tile (constant across the inter axis)
    w13_ref : (dim, 2*tn)  bf16  fused [w1_slab | w3_slab] gate/up weights
    w2_ref  : (tn, dim)    bf16  down-projection slab
    o_ref   : (tt, dim)    bf16  output tile (written on the last inter step)
    acc_ref : (tt, dim)    f32   VMEM accumulator over inter slabs
    """
    k = pl.program_id(1)

    @pl.when(k == 0)
    def _():
        acc_ref[...] = jnp.zeros_like(acc_ref)

    tn = w13_ref.shape[1] // 2
    x = x_ref[...]

    # Fused gate/up projection: one MXU pass yields both y1 and y2 slabs (f32 acc).
    y = jnp.dot(x, w13_ref[...], preferred_element_type=jnp.float32)
    y1 = y[:, :tn]                        # f32 gate pre-activation (no bf16 round-trip)
    y2 = y[:, tn:].astype(jnp.bfloat16)   # Linear-output rounding, matches torch

    # silu in f32 (sigmoid goes to the EUP); product rounded to bf16 so the second
    # matmul runs in bf16 on the MXU.
    silu = y1 * jax.nn.sigmoid(y1)
    h = (silu * y2.astype(jnp.float32)).astype(jnp.bfloat16)

    # Down-projection slab, accumulated in f32; single bf16 cast at the end.
    acc_ref[...] += jnp.dot(h, w2_ref[...], preferred_element_type=jnp.float32)

    @pl.when(k == pl.num_programs(1) - 1)
    def _():
        o_ref[...] = acc_ref[...].astype(o_ref.dtype)


# ---------------------------------------------------------------------------
# One-time weight preparation (model init — NOT the per-call hot path)
# ---------------------------------------------------------------------------

def prepare_expert_weights(w1, w2, w3, *, inter_tile=None, max_tokens_hint=None):
    """Build the kernel weight layout once.

    w1, w3 : (inter_dim, dim)  bf16  (PyTorch Linear layout)
    w2     : (dim, inter_dim)  bf16

    Returns a dict holding the fused/interleaved (dim, n_slabs*2*tn) w13, the
    (inter_p, dim) w2t, and the static tiling config.
    """
    inter_dim, dim = w1.shape
    kind = _device_kind()
    vmem_cap = _vmem_capacity_bytes(kind)

    if inter_tile is None:
        # v7x has only 64 MiB VMEM: smaller slab, keep the larger token tile instead.
        inter_tile = 256 if "v7" in kind else 512
        if max_tokens_hint is not None and max_tokens_hint < 256:
            # Decode regime: purely weight-streaming-bound; maximize the slab
            # (double-buffered w13 + w2 slabs cost ~12*dim*tn bytes).
            budget = max(vmem_cap // 2, 8 << 20)
            inter_tile = max(128, (budget // (12 * dim)) // 128 * 128)

    if inter_dim <= inter_tile:
        tn = inter_dim
        inter_p = inter_dim
    else:
        tn = max(128, inter_tile // 128 * 128)
        inter_p = _round_up(inter_dim, tn)
    n_slabs = inter_p // tn

    # Interleave slab-wise so each grid step reads ONE contiguous (dim, 2*tn)
    # block: columns [0:tn] = w1 slab k, [tn:2tn] = w3 slab k.
    w1t = jnp.pad(w1.T, ((0, 0), (0, inter_p - inter_dim)))   # (dim, inter_p)
    w3t = jnp.pad(w3.T, ((0, 0), (0, inter_p - inter_dim)))   # (dim, inter_p)
    w13 = jnp.concatenate(
        [w1t.reshape(dim, n_slabs, tn), w3t.reshape(dim, n_slabs, tn)], axis=-1
    ).reshape(dim, n_slabs * 2 * tn)
    w2t = jnp.pad(w2.T, ((0, inter_p - inter_dim), (0, 0)))   # (inter_p, dim)

    return {
        "w13": w13,
        "w2t": w2t,
        "dim": dim,
        "inter_dim": inter_dim,
        "inter_p": inter_p,
        "tn": tn,
        "n_slabs": n_slabs,
        "device_kind": kind,
        "vmem_cap": vmem_cap,
    }


# ---------------------------------------------------------------------------
# Forward
# ---------------------------------------------------------------------------

@functools.partial(
    jax.jit, static_argnames=("tt", "tn", "n_slabs", "vmem_limit", "use_buffered")
)
def _expert_call(x_p, w13, w2t, *, tt, tn, n_slabs, vmem_limit, use_buffered):
    tokens_p, dim = x_p.shape
    inter_p = n_slabs * tn
    grid = (tokens_p // tt, n_slabs)

    # x / out block indices are constant across the inner reduction axis ->
    # single-buffer them (saves VMEM; matters most on v7x's 64 MiB).
    io_bufs = 1 if use_buffered else None

    in_specs = [
        _block_spec((tt, dim), lambda i, k: (i, 0), buffers=io_bufs),
        _block_spec((dim, 2 * tn), lambda i, k: (0, k)),
        _block_spec((tn, dim), lambda i, k: (k, 0)),
    ]
    out_spec = _block_spec((tt, dim), lambda i, k: (i, 0), buffers=io_bufs)

    flops = 6 * tokens_p * dim * inter_p
    # x read + out write once; weights re-streamed once per token tile.
    bytes_accessed = 2 * (2 * tokens_p * dim) + (tokens_p // tt) * 2 * (3 * dim * inter_p)

    return pl.pallas_call(
        _expert_kernel,
        out_shape=jax.ShapeDtypeStruct((tokens_p, dim), jnp.bfloat16),
        grid_spec=pltpu.PrefetchScalarGridSpec(
            num_scalar_prefetch=0,
            grid=grid,
            in_specs=in_specs,
            out_specs=out_spec,
            scratch_shapes=[pltpu.VMEM((tt, dim), jnp.float32)],
        ),
        compiler_params=pltpu.CompilerParams(
            # Token axis parallel (shards across v7x's 2 TensorCores), reduction last.
            dimension_semantics=("parallel", "arbitrary"),
            vmem_limit_bytes=vmem_limit,
        ),
        cost_estimate=pl.CostEstimate(
            flops=flops,
            transcendentals=tokens_p * inter_p,
            bytes_accessed=bytes_accessed,
        ),
    )(x_p, w13, w2t)


def expert_forward(x, prepared, *, token_tile=None):
    """SwiGLU expert: y = (silu(x @ w1^T) * (x @ w3^T)) @ w2^T.

    x        : (tokens, dim) bf16 — flatten (batch, seq, dim) outside.
    prepared : output of prepare_expert_weights().
    """
    tokens, dim = x.shape
    assert dim == prepared["dim"], "dim mismatch between x and prepared weights"

    kind = prepared["device_kind"]
    tn = prepared["tn"]
    n_slabs = prepared["n_slabs"]

    if token_tile is None:
        # v5e is already compute-bound at 256; v6e/v7x need a larger token tile so
        # the re-streamed weights see >=512 flops/byte.
        token_tile = 256 if ("v5e" in kind or "v5 lite" in kind) else 512

    tt = min(token_tile, _round_up(tokens, 16))   # multiple of 16 (bf16 sublane pack)
    tokens_p = _round_up(tokens, tt)
    x_p = jnp.pad(x, ((0, tokens_p - tokens), (0, 0))) if tokens_p != tokens else x

    vmem_limit = _vmem_limit(tt, tn, dim, prepared["vmem_cap"])
    kwargs = dict(tt=tt, tn=tn, n_slabs=n_slabs, vmem_limit=vmem_limit)

    if _BUFFERED_OK[0]:
        try:
            out = _expert_call(x_p, prepared["w13"], prepared["w2t"],
                               use_buffered=True, **kwargs)
            return out[:tokens]
        except Exception:
            _BUFFERED_OK[0] = False  # installed Pallas rejects Buffered specs
    out = _expert_call(x_p, prepared["w13"], prepared["w2t"],
                       use_buffered=False, **kwargs)
    return out[:tokens]


def expert_reference(x, w1, w2, w3):
    """Pure-JAX reference matching the PyTorch Expert.forward semantics."""
    y1 = jnp.dot(x, w1.T, preferred_element_type=jnp.float32).astype(jnp.bfloat16)
    y2 = jnp.dot(x, w3.T, preferred_element_type=jnp.float32).astype(jnp.bfloat16)
    y1f = y1.astype(jnp.float32)
    silu = (y1f * jax.nn.sigmoid(y1f)).astype(jnp.bfloat16)
    h = silu * y2
    return jnp.dot(h, w2.T, preferred_element_type=jnp.float32).astype(jnp.bfloat16)


# ---------------------------------------------------------------------------
# Self-test
# ---------------------------------------------------------------------------

if __name__ == "__main__":
    # TODO(synk): the torch module also print()s intermediates; host-side debug I/O
    # is intentionally not replicated in the kernel.
    base_key = jax.random.PRNGKey(0)
    key1, key2 = jax.random.split(base_key, 2)

    def make_case(key, batch, seq, dim, inter_dim):
        kx, k1, k2, k3 = jax.random.split(key, 4)
        x3d = jax.random.normal(kx, (batch, seq, dim), dtype=jnp.float32).astype(jnp.bfloat16)
        w1 = (0.05 * jax.random.normal(k1, (inter_dim, dim), dtype=jnp.float32)).astype(jnp.bfloat16)
        w2 = (0.05 * jax.random.normal(k2, (dim, inter_dim), dtype=jnp.float32)).astype(jnp.bfloat16)
        w3 = (0.05 * jax.random.normal(k3, (inter_dim, dim), dtype=jnp.float32)).astype(jnp.bfloat16)
        return x3d, w1, w2, w3

    # --- Case 1: module-sized shapes (batch=2, seq=8 -> 16 tokens, dim=32, inter=64)
    x3d, w1, w2, w3 = make_case(key1, 2, 8, 32, 64)
    x = x3d.reshape(-1, 32)                       # flatten (batch, seq, dim)
    prep = prepare_expert_weights(w1, w2, w3)     # one-time init, not per call

    out = jax.block_until_ready(expert_forward(x, prep))
    ref = expert_reference(x, w1, w2, w3)
    assert out.shape == x.shape and out.dtype == jnp.bfloat16
    err = float(jnp.max(jnp.abs(out.astype(jnp.float32) - ref.astype(jnp.float32))))
    assert err < 1e-2, f"case1 max abs err {err}"

    # Token-padding path (tokens not a multiple of the tile).
    out_odd = jax.block_until_ready(expert_forward(x[:10], prep))
    ref_odd = expert_reference(x[:10], w1, w2, w3)
    err_odd = float(jnp.max(jnp.abs(out_odd.astype(jnp.float32) - ref_odd.astype(jnp.float32))))
    assert out_odd.shape == (10, 32) and err_odd < 1e-2, f"case1-odd max abs err {err_odd}"

    # --- Case 2: multi-tile grid — 40 tokens @ token_tile=16 (3 token tiles, padded)
    # and inter_dim=256 @ inter_tile=128 (2 reduction slabs). Exercises the f32
    # accumulator across slabs and the single-buffered x/out across i-transitions.
    x3d2, v1, v2, v3 = make_case(key2, 5, 8, 128, 256)
    x2 = x3d2.reshape(-1, 128)[:40]
    prep2 = prepare_expert_weights(v1, v2, v3, inter_tile=128)
    out2 = jax.block_until_ready(expert_forward(x2, prep2, token_tile=16))
    ref2 = expert_reference(x2, v1, v2, v3)
    err2 = float(jnp.max(jnp.abs(out2.astype(jnp.float32) - ref2.astype(jnp.float32))))
    assert out2.shape == (40, 128) and err2 < 1e-2, f"case2 max abs err {err2}"

    print("KERNEL_OK")
</pallas_src>

<mosaic_0001>
module attributes {stable_mosaic.version = 11 : i64} {
  func.func @_expert_kernel(%arg0: i32, %arg1: i32, %arg2: memref<16x32xbf16, #tpu.memory_space<vmem>>, %arg3: memref<32x128xbf16, #tpu.memory_space<vmem>>, %arg4: memref<64x32xbf16, #tpu.memory_space<vmem>>, %arg5: memref<16x32xbf16, #tpu.memory_space<vmem>>, %arg6: memref<16x32xf32, #tpu.memory_space<vmem>>) attributes {dimension_semantics = [#tpu.dimension_semantics<parallel>, #tpu.dimension_semantics<arbitrary>], iteration_bounds = array<i64: 1, 1>, scalar_prefetch = 0 : i64, scratch_operands = 1 : i64, tpu.core_type = #tpu.core_type<tc>, window_params = [{pipeline_mode = #tpu.pipeline_mode<synchronous>, transform_indices = @transform_0, window_bounds = array<i64: 16, 32>}, {transform_indices = @transform_1, window_bounds = array<i64: 32, 128>}, {transform_indices = @transform_2, window_bounds = array<i64: 64, 32>}, {pipeline_mode = #tpu.pipeline_mode<synchronous>, transform_indices = @transform_3, window_bounds = array<i64: 16, 32>}]} {
    %c0_i32 = arith.constant 0 : i32
    %0 = arith.cmpi eq, %arg1, %c0_i32 : i32
    %1 = arith.extui %0 : i1 to i32
    %c0_i32_0 = arith.constant 0 : i32
    %2 = arith.cmpi ne, %1, %c0_i32_0 : i32
    scf.if %2 {
      %cst_14 = arith.constant 0.000000e+00 : f32
      %26 = vector.broadcast %cst_14 : f32 to vector<16x32xf32>
      %c0_15 = arith.constant 0 : index
      %c0_16 = arith.constant 0 : index
      %27 = vector.load %arg6[%c0_15, %c0_16] : memref<16x32xf32, #tpu.memory_space<vmem>>, vector<16x32xf32>
      tpu.vector_store %arg6[%c0_15, %c0_16], %26 {strides = array<i32>} : memref<16x32xf32, #tpu.memory_space<vmem>>, vector<16x32xf32>,
    } else {
    }
    %c0 = arith.constant 0 : index
    %c0_1 = arith.constant 0 : index
    %3 = vector.load %arg2[%c0, %c0_1] : memref<16x32xbf16, #tpu.memory_space<vmem>>, vector<16x32xbf16>
    %c0_2 = arith.constant 0 : index
    %c0_3 = arith.constant 0 : index
    %4 = vector.load %arg3[%c0_2, %c0_3] : memref<32x128xbf16, #tpu.memory_space<vmem>>, vector<32x128xbf16>
    %cst = arith.constant dense<0.000000e+00> : vector<16x128xf32>
    %5 = tpu.matmul %3, %4, %cst {dimension_numbers = #tpu.dot_dimension_numbers<[1], [0], [0], [1], [0, 0, 1, 1], [], []>} : vector<16x32xbf16>, vector<32x128xbf16>, vector<16x128xf32> -> vector<16x128xf32>
    %6 = vector.extract_strided_slice %5 {offsets = [0, 0], sizes = [16, 64], strides = [1, 1]} : vector<16x128xf32> to vector<16x64xf32>
    %7 = vector.extract_strided_slice %5 {offsets = [0, 64], sizes = [16, 64], strides = [1, 1]} : vector<16x128xf32> to vector<16x64xf32>
    %8 = arith.truncf %7 : vector<16x64xf32> to vector<16x64xbf16>
    %9 = arith.negf %6 : vector<16x64xf32>
    %10 = math.exp %9 : vector<16x64xf32>
    %cst_4 = arith.constant 1.000000e+00 : f32
    %11 = vector.broadcast %cst_4 : f32 to vector<16x64xf32>
    %12 = arith.addf %11, %10 : vector<16x64xf32>
    %13 = arith.divf %11, %12 : vector<16x64xf32>
    %14 = arith.mulf %6, %13 : vector<16x64xf32>
    %15 = arith.extf %8 : vector<16x64xbf16> to vector<16x64xf32>
    %16 = arith.mulf %14, %15 : vector<16x64xf32>
    %17 = arith.truncf %16 : vector<16x64xf32> to vector<16x64xbf16>
    %c0_5 = arith.constant 0 : index
    %c0_6 = arith.constant 0 : index
    %18 = vector.load %arg6[%c0_5, %c0_6] : memref<16x32xf32, #tpu.memory_space<vmem>>, vector<16x32xf32>
    %c0_7 = arith.constant 0 : index
    %c0_8 = arith.constant 0 : index
    %19 = vector.load %arg4[%c0_7, %c0_8] : memref<64x32xbf16, #tpu.memory_space<vmem>>, vector<64x32xbf16>
    %cst_9 = arith.constant dense<0.000000e+00> : vector<16x32xf32>
    %20 = tpu.matmul %17, %19, %cst_9 {dimension_numbers = #tpu.dot_dimension_numbers<[1], [0], [0], [1], [0, 0, 1, 1], [], []>} : vector<16x64xbf16>, vector<64x32xbf16>, vector<16x32xf32> -> vector<16x32xf32>
    %21 = arith.addf %18, %20 : vector<16x32xf32>
    %c0_10 = arith.constant 0 : index
    %c0_11 = arith.constant 0 : index
    %22 = vector.load %arg6[%c0_10, %c0_11] : memref<16x32xf32, #tpu.memory_space<vmem>>, vector<16x32xf32>
    tpu.vector_store %arg6[%c0_10, %c0_11], %21 {strides = array<i32>} : memref<16x32xf32, #tpu.memory_space<vmem>>, vector<16x32xf32>,
    %c0_i32_12 = arith.constant 0 : i32
    %23 = arith.cmpi eq, %arg1, %c0_i32_12 : i32
    %24 = arith.extui %23 : i1 to i32
    %c0_i32_13 = arith.constant 0 : i32
    %25 = arith.cmpi ne, %24, %c0_i32_13 : i32
    scf.if %25 {
      %c0_14 = arith.constant 0 : index
      %c0_15 = arith.constant 0 : index
      %26 = vector.load %arg6[%c0_14, %c0_15] : memref<16x32xf32, #tpu.memory_space<vmem>>, vector<16x32xf32>
      %27 = arith.truncf %26 : vector<16x32xf32> to vector<16x32xbf16>
      %c0_16 = arith.constant 0 : index
      %c0_17 = arith.constant 0 : index
      %28 = vector.load %arg5[%c0_16, %c0_17] : memref<16x32xbf16, #tpu.memory_space<vmem>>, vector<16x32xbf16>
      tpu.vector_store %arg5[%c0_16, %c0_17], %27 {strides = array<i32>} : memref<16x32xbf16, #tpu.memory_space<vmem>>, vector<16x32xbf16>,
    } else {
    }
    return
  }
  func.func @transform_0(%arg0: i32, %arg1: i32) -> (i32, i32) {
    %c0_i32 = arith.constant 0 : i32
    %c0_i32_0 = arith.constant 0 : i32
    return %arg0, %c0_i32 : i32, i32
  }
  func.func @transform_1(%arg0: i32, %arg1: i32) -> (i32, i32) {
    %c0_i32 = arith.constant 0 : i32
    %c0_i32_0 = arith.constant 0 : i32
    return %c0_i32, %arg1 : i32, i32
  }
  func.func @transform_2(%arg0: i32, %arg1: i32) -> (i32, i32) {
    %c0_i32 = arith.constant 0 : i32
    %c0_i32_0 = arith.constant 0 : i32
    return %arg1, %c0_i32 : i32, i32
  }
  func.func @transform_3(%arg0: i32, %arg1: i32) -> (i32, i32) {
    %c0_i32 = arith.constant 0 : i32
    %c0_i32_0 = arith.constant 0 : i32
    return %arg0, %c0_i32 : i32, i32
  }
}

module attributes {stable_mosaic.version = 11 : i64} {
  func.func @_expert_kernel(%arg0: i32, %arg1: i32, %arg2: memref<16x32xbf16, #tpu.memory_space<vmem>>, %arg3: memref<32x128xbf16, #tpu.memory_space<vmem>>, %arg4: memref<64x32xbf16, #tpu.memory_space<vmem>>, %arg5: memref<16x32xbf16, #tpu.memory_space<vmem>>, %arg6: memref<16x32xf32, #tpu.memory_space<vmem>>) attributes {dimension_semantics = [#tpu.dimension_semantics<parallel>, #tpu.dimension_semantics<arbitrary>], iteration_bounds = array<i64: 1, 1>, scalar_prefetch = 0 : i64, scratch_operands = 1 : i64, tpu.core_type = #tpu.core_type<tc>, window_params = [{transform_indices = @transform_0, window_bounds = array<i64: 16, 32>}, {transform_indices = @transform_1, window_bounds = array<i64: 32, 128>}, {transform_indices = @transform_2, window_bounds = array<i64: 64, 32>}, {transform_indices = @transform_3, window_bounds = array<i64: 16, 32>}]} {
    %c0_i32 = arith.constant 0 : i32
    %0 = arith.cmpi eq, %arg1, %c0_i32 : i32
    %1 = arith.extui %0 : i1 to i32
    %c0_i32_0 = arith.constant 0 : i32
    %2 = arith.cmpi ne, %1, %c0_i32_0 : i32
    scf.if %2 {
      %cst_14 = arith.constant 0.000000e+00 : f32
      %26 = vector.broadcast %cst_14 : f32 to vector<16x32xf32>
      %c0_15 = arith.constant 0 : index
      %c0_16 = arith.constant 0 : index
      %27 = vector.load %arg6[%c0_15, %c0_16] : memref<16x32xf32, #tpu.memory_space<vmem>>, vector<16x32xf32>
      tpu.vector_store %arg6[%c0_15, %c0_16], %26 {strides = array<i32>} : memref<16x32xf32, #tpu.memory_space<vmem>>, vector<16x32xf32>,
    } else {
    }
    %c0 = arith.constant 0 : index
    %c0_1 = arith.constant 0 : index
    %3 = vector.load %arg2[%c0, %c0_1] : memref<16x32xbf16, #tpu.memory_space<vmem>>, vector<16x32xbf16>
    %c0_2 = arith.constant 0 : index
    %c0_3 = arith.constant 0 : index
    %4 = vector.load %arg3[%c0_2, %c0_3] : memref<32x128xbf16, #tpu.memory_space<vmem>>, vector<32x128xbf16>
    %cst = arith.constant dense<0.000000e+00> : vector<16x128xf32>
    %5 = tpu.matmul %3, %4, %cst {dimension_numbers = #tpu.dot_dimension_numbers<[1], [0], [0], [1], [0, 0, 1, 1], [], []>} : vector<16x32xbf16>, vector<32x128xbf16>, vector<16x128xf32> -> vector<16x128xf32>
    %6 = vector.extract_strided_slice %5 {offsets = [0, 0], sizes = [16, 64], strides = [1, 1]} : vector<16x128xf32> to vector<16x64xf32>
    %7 = vector.extract_strided_slice %5 {offsets = [0, 64], sizes = [16, 64], strides = [1, 1]} : vector<16x128xf32> to vector<16x64xf32>
    %8 = arith.truncf %7 : vector<16x64xf32> to vector<16x64xbf16>
    %9 = arith.negf %6 : vector<16x64xf32>
    %10 = math.exp %9 : vector<16x64xf32>
    %cst_4 = arith.constant 1.000000e+00 : f32
    %11 = vector.broadcast %cst_4 : f32 to vector<16x64xf32>
    %12 = arith.addf %11, %10 : vector<16x64xf32>
    %13 = arith.divf %11, %12 : vector<16x64xf32>
    %14 = arith.mulf %6, %13 : vector<16x64xf32>
    %15 = arith.extf %8 : vector<16x64xbf16> to vector<16x64xf32>
    %16 = arith.mulf %14, %15 : vector<16x64xf32>
    %17 = arith.truncf %16 : vector<16x64xf32> to vector<16x64xbf16>
    %c0_5 = arith.constant 0 : index
    %c0_6 = arith.constant 0 : index
    %18 = vector.load %arg6[%c0_5, %c0_6] : memref<16x32xf32, #tpu.memory_space<vmem>>, vector<16x32xf32>
    %c0_7 = arith.constant 0 : index
    %c0_8 = arith.constant 0 : index
    %19 = vector.load %arg4[%c0_7, %c0_8] : memref<64x32xbf16, #tpu.memory_space<vmem>>, vector<64x32xbf16>
    %cst_9 = arith.constant dense<0.000000e+00> : vector<16x32xf32>
    %20 = tpu.matmul %17, %19, %cst_9 {dimension_numbers = #tpu.dot_dimension_numbers<[1], [0], [0], [1], [0, 0, 1, 1], [], []>} : vector<16x64xbf16>, vector<64x32xbf16>, vector<16x32xf32> -> vector<16x32xf32>
    %21 = arith.addf %18, %20 : vector<16x32xf32>
    %c0_10 = arith.constant 0 : index
    %c0_11 = arith.constant 0 : index
    %22 = vector.load %arg6[%c0_10, %c0_11] : memref<16x32xf32, #tpu.memory_space<vmem>>, vector<16x32xf32>
    tpu.vector_store %arg6[%c0_10, %c0_11], %21 {strides = array<i32>} : memref<16x32xf32, #tpu.memory_space<vmem>>, vector<16x32xf32>,
    %c0_i32_12 = arith.constant 0 : i32
    %23 = arith.cmpi eq, %arg1, %c0_i32_12 : i32
    %24 = arith.extui %23 : i1 to i32
    %c0_i32_13 = arith.constant 0 : i32
    %25 = arith.cmpi ne, %24, %c0_i32_13 : i32
    scf.if %25 {
      %c0_14 = arith.constant 0 : index
      %c0_15 = arith.constant 0 : index
      %26 = vector.load %arg6[%c0_14, %c0_15] : memref<16x32xf32, #tpu.memory_space<vmem>>, vector<16x32xf32>
      %27 = arith.truncf %26 : vector<16x32xf32> to vector<16x32xbf16>
      %c0_16 = arith.constant 0 : index
      %c0_17 = arith.constant 0 : index
      %28 = vector.load %arg5[%c0_16, %c0_17] : memref<16x32xbf16, #tpu.memory_space<vmem>>, vector<16x32xbf16>
      tpu.vector_store %arg5[%c0_16, %c0_17], %27 {strides = array<i32>} : memref<16x32xbf16, #tpu.memory_space<vmem>>, vector<16x32xbf16>,
    } else {
    }
    return
  }
  func.func @transform_0(%arg0: i32, %arg1: i32) -> (i32, i32) {
    %c0_i32 = arith.constant 0 : i32
    %c0_i32_0 = arith.constant 0 : i32
    return %arg0, %c0_i32 : i32, i32
  }
  func.func @transform_1(%arg0: i32, %arg1: i32) -> (i32, i32) {
    %c0_i32 = arith.constant 0 : i32
    %c0_i32_0 = arith.constant 0 : i32
    return %c0_i32, %arg1 : i32, i32
  }
  func.func @transform_2(%arg0: i32, %arg1: i32) -> (i32, i32) {
    %c0_i32 = arith.constant 0 : i32
    %c0_i32_0 = arith.constant 0 : i32
    return %arg1, %c0_i32 : i32, i32
  }
  func.func @transform_3(%arg0: i32, %arg1: i32) -> (i32, i32) {
    %c0_i32 = arith.constant 0 : i32
    %c0_i32_0 = arith.constant 0 : i32
    return %arg0, %c0_i32 : i32, i32
  }
}

</mosaic_0001>

<llo_original>
// kernel: _expert_call.1
$region0: #{_expert_call.1}
  #allocation0 [shape = 'u32[]', space=smem, size = 0x4, offset = 0x4, fixed_abs, tag = 'smem constant byte address 0x4 - core index']
  #allocation1 [shape = 'u32[144,128]{1,0:T(1,128)}', space=vmem, size = 0x12000, scoped, tag = 'internal scratch']
  #allocation2 [shape = 'f32[16,32]{1,0:T(8,128)}', space=vmem, size = 0x2000, scoped, tag = 'scratch operand']
  %s0 = inlined_call_operand.vmem [shape: bf16[16,32], index: 0, kind: input, shape index: {}]
  %s1 = inlined_call_operand.vmem [shape: bf16[32,128], index: 1, kind: input, shape index: {}]
  %s2 = inlined_call_operand.vmem [shape: bf16[64,32], index: 2, kind: input, shape index: {}]
  %s3 = inlined_call_operand.hbm [shape: bf16[16,32], index: 3, kind: output, shape index: {}]
  %s4 = sld [smem:[#allocation0]]
  $region30: #{_expert_call.1} parent=0
    _
  %s6 = ssub.s32 1, %s4
  %s7 = scalar_select 0, %s6, %s4
  $region1: #{_expert_call.1} parent=0
    #allocation3 [shape = 'u8[4096]{0}', space=vmem, size = 0x1000, scoped, tag = 'output window, operand 0, single buffered']
    #allocation4 [shape = 's32[1]{0}', space=sflag, size = 0x4, scoped, tag = 'scoped memory for _expert_call.1']
    %8 = vsyncpa [#allocation4], 0
    // Predicated region
    $region2: #{_expert_call.1} parent=1 // pred_check
      _
    $region3: #{_expert_call.1} parent=1 // pred_check_branch
      %10 = sbr.rel (0) target = $region5
    $region4: #{_expert_call.1} parent=1 // pred_region
      _
    $region5: #{_expert_call.1} parent=1 // pred_fallthru
      _
    // Predicated region
    $region6: #{_expert_call.1} parent=1 // pred_check
      _
    $region7: #{_expert_call.1} parent=1 // pred_check_branch
      %12 = sbr.rel (0) target = $region9
    $region8: #{_expert_call.1} parent=1 // pred_region
      _
    $region9: #{_expert_call.1} parent=1 // pred_fallthru
      _
    // Predicated region
    $region10: #{_expert_call.1} parent=1 // pred_check
      _
    $region11: #{_expert_call.1} parent=1 // pred_check_branch
      %14 = sbr.rel (0) target = $region13
    $region12: #{_expert_call.1} parent=1 // pred_region
      _
    $region13: #{_expert_call.1} parent=1 // pred_fallthru
      _
    %p16 = scmp.eq.s32.totalorder 0, 0
    // Predicated region
    $region14: #{_expert_call.1} parent=1 // pred_check
      %p17 = pneg %p16
    $region15: #{_expert_call.1} parent=1 // pred_check_branch
      %19 = sbr.rel (%p17) target = $region17
    $region16: #{_expert_call.1} parent=1 // pred_region
      %vm20 = vcmask 261120
      %21 = vst.msk [vmem:[#allocation2] sm:$0xff] %vm20, 0.0
      %22 = vst.msk [vmem:[#allocation2 + $0x8] sm:$0xff] %vm20, 0.0
    $region17: #{_expert_call.1} parent=1 // pred_fallthru
      _
    %v23 = vld [vmem:[%s0] sm:$0xf]
    %v24 = vld [vmem:[%s0 + $0x4] sm:$0xf]
    %v25 = vld [vmem:[%s1] sm:$0xf]
    %v26 = vld [vmem:[%s1 + $0x4] sm:$0xf]
    %v27 = vld [vmem:[%s1 + $0x8] sm:$0xf]
    %v28 = vld [vmem:[%s1 + $0xc] sm:$0xf]
    %v31 = vunpack.c.l.b16 %v23
    %v32 = vunpack.c.l.b16 %v24
    %v33 = vpack.c.b16 %v32, %v31
    %v38 = vunpack.c.l.b16 %v25
    %v39 = vunpack.c.l.b16 %v26
    %v40 = vunpack.c.l.b16 %v27
    %v41 = vunpack.c.l.b16 %v28
    %v42 = vpack.c.b16 %v39, %v38
    %v43 = vpack.c.b16 %v41, %v40
    %vm46 = vcmask 261120
    %v48 = vsel %vm46, %v33, 0
    %50 = vmatprep.subr.bf16.mxu0 0
    %51 = vmatpush1.bf16.msra.mxu0 0
    %52 = vmatprep.subr.bf16.mxu0 0
    %53 = vmatpush1.bf16.msra.mxu0 0
    %54 = vmatprep.subr.bf16.mxu0 0
    %55 = vmatpush1.bf16.msra.mxu0 0
    %56 = vmatprep.subr.bf16.mxu0 0
    %57 = vmatpush1.bf16.msra.mxu0 0
    %58 = vmatprep.subr.bf16.mxu0 0
    %59 = vmatpush1.bf16.msra.mxu0 0
    %60 = vmatprep.subr.bf16.mxu0 0
    %61 = vmatpush1.bf16.msra.mxu0 0
    %62 = vmatprep.subr.bf16.mxu0 0
    %63 = vmatpush1.bf16.msra.mxu0 %v43
    %64 = vmatprep.subr.bf16.mxu0 0
    %65 = vmatpush1.bf16.msra.mxu0 %v42
    %66 = vmatprep.subr.bf16.mxu0 0
    %67 = vmatpush2.bf16.msra.mxu0 0
    %68 = vmatprep.subr.bf16.mxu0 0
    %69 = vmatpush2.bf16.msra.mxu0 0
    %70 = vmatprep.subr.bf16.mxu0 0
    %71 = vmatpush2.bf16.msra.mxu0 0
    %72 = vmatprep.subr.bf16.mxu0 0
    %73 = vmatpush2.bf16.msra.mxu0 0
    %74 = vmatprep.subr.bf16.mxu0 0
    %75 = vmatpush2.bf16.msra.mxu0 0
    %76 = vmatprep.subr.bf16.mxu0 0
    %77 = vmatpush2.bf16.msra.mxu0 0
    %78 = vmatprep.subr.bf16.mxu0 0
    %79 = vmatpush2.bf16.msra.mxu0 0
    %80 = vmatprep.subr.bf16.mxu0 0
    %81 = vmatpush2.bf16.msra.mxu0 0
    %82 = vmatprep.mubr.bf16.mxu0 0
    %83 = vmatmul.mubr.bf16.gmra.mxu0 %v48
    %v84 = vpop.f32.mrf.mxu0
    %v85 = vadd.f32 0.0, %v84
    %v86 = vpop.f32.mrf.mxu0
    %v87 = vpop.f32.mrf.mxu0
    %v88 = vadd.f32 0.0, %v87
    %v89 = vpop.f32.mrf.mxu0
    %90 = vdwg.mxu0
    %v91 = vpack.c.bf16 %v88, %v85
    %v92 = vxor.u32 %v85, 2147483648
    %v93 = vxor.u32 %v88, 2147483648
    %v94 = vmul.f32 %v92, 1.442695
    %v95 = vpow.pop %v94
    %v96 = vmul.f32 %v93, 1.442695
    %v97 = vpow.pop %v96
    %v98 = vadd.f32 %v95, 1.0
    %v99 = vadd.f32 %v97, 1.0
    %v100 = vrcp.pop %v98
    %v101 = vmul.f32 1.0, %v100
    %v102 = vrcp.pop %v99
    %v103 = vmul.f32 1.0, %v102
    %v104 = vmul.f32 %v85, %v101
    %v105 = vmul.f32 %v88, %v103
    %v106 = vunpack.c.l.bf16 %v91
    %v107 = vunpack.c.h.bf16 %v91
    %110 = vrot.lane.b32.xlu0 %v106, 64
    %v111 = vpop.permute.xlu0 %110
    %112 = vrot.lane.b32.xlu0 %v107, 64
    %v113 = vpop.permute.xlu0 %112
    %v116 = vmul.f32 %v104, %v111
    %v117 = vmul.f32 %v105, %v113
    %v118 = vpack.c.bf16 %v117, %v116
    %v119 = vld [vmem:[#allocation2] sm:$0xff]
    %v120 = vld [vmem:[#allocation2 + $0x8] sm:$0xff]
    %v121 = vld [vmem:[%s2] sm:$0xf]
    %v122 = vld [vmem:[%s2 + $0x4] sm:$0xf]
    %v123 = vld [vmem:[%s2 + $0x8] sm:$0xf]
    %v124 = vld [vmem:[%s2 + $0xc] sm:$0xf]
    %v125 = vld [vmem:[%s2 + $0x10] sm:$0xf]
    %v126 = vld [vmem:[%s2 + $0x14] sm:$0xf]
    %v127 = vld [vmem:[%s2 + $0x18] sm:$0xf]
    %v128 = vld [vmem:[%s2 + $0x1c] sm:$0xf]
    %v137 = vunpack.c.l.b16 %v121
    %v138 = vunpack.c.l.b16 %v122
    %v139 = vunpack.c.l.b16 %v123
    %v140 = vunpack.c.l.b16 %v124
    %v141 = vunpack.c.l.b16 %v125
    %v142 = vunpack.c.l.b16 %v126
    %v143 = vunpack.c.l.b16 %v127
    %v144 = vunpack.c.l.b16 %v128
    %v145 = vpack.c.b16 %v138, %v137
    %v146 = vpack.c.b16 %v140, %v139
    %v147 = vpack.c.b16 %v142, %v141
    %v148 = vpack.c.b16 %v144, %v143
    %vm153 = vcmask 523264
    %v155 = vsel %vm153, %v118, 0
    %157 = vmatprep.subr.bf16.mxu0 0
    %158 = vmatpush1.bf16.msra.mxu0 0
    %159 = vmatprep.subr.bf16.mxu0 0
    %160 = vmatpush1.bf16.msra.mxu0 0
    %161 = vmatprep.subr.bf16.mxu0 0
    %162 = vmatpush1.bf16.msra.mxu0 0
    %163 = vmatprep.subr.bf16.mxu0 0
    %164 = vmatpush1.bf16.msra.mxu0 0
    %165 = vmatprep.subr.bf16.mxu0 0
    %166 = vmatpush1.bf16.msra.mxu0 %v148
    %167 = vmatprep.subr.bf16.mxu0 0
    %168 = vmatpush1.bf16.msra.mxu0 %v147
    %169 = vmatprep.subr.bf16.mxu0 0
    %170 = vmatpush1.bf16.msra.mxu0 %v146
    %171 = vmatprep.subr.bf16.mxu0 0
    %172 = vmatpush1.bf16.msra.mxu0 %v145
    %173 = vmatprep.subr.bf16.mxu0 0
    %174 = vmatpush2.bf16.msra.mxu0 0
    %175 = vmatprep.subr.bf16.mxu0 0
    %176 = vmatpush2.bf16.msra.mxu0 0
    %177 = vmatprep.subr.bf16.mxu0 0
    %178 = vmatpush2.bf16.msra.mxu0 0
    %179 = vmatprep.subr.bf16.mxu0 0
    %180 = vmatpush2.bf16.msra.mxu0 0
    %181 = vmatprep.subr.bf16.mxu0 0
    %182 = vmatpush2.bf16.msra.mxu0 0
    %183 = vmatprep.subr.bf16.mxu0 0
    %184 = vmatpush2.bf16.msra.mxu0 0
    %185 = vmatprep.subr.bf16.mxu0 0
    %186 = vmatpush2.bf16.msra.mxu0 0
    %187 = vmatprep.subr.bf16.mxu0 0
    %188 = vmatpush2.bf16.msra.mxu0 0
    %189 = vmatprep.mubr.bf16.mxu0 0
    %190 = vmatmul.mubr.bf16.gmra.mxu0 %v155
    %v191 = vpop.f32.mrf.mxu0
    %v192 = vadd.f32 0.0, %v191
    %v193 = vpop.f32.mrf.mxu0
    %v194 = vpop.f32.mrf.mxu0
    %v195 = vadd.f32 0.0, %v194
    %v196 = vpop.f32.mrf.mxu0
    %197 = vdwg.mxu0
    %v198 = vadd.f32 %v119, %v192
    %v199 = vadd.f32 %v120, %v195
    %200 = vst.msk [vmem:[#allocation2] sm:$0xff] %vm46, %v198
    %201 = vst.msk [vmem:[#allocation2 + $0x8] sm:$0xff] %vm46, %v199
    // Predicated region
    $region18: #{_expert_call.1} parent=1 // pred_check
      %p202 = pneg %p16
    $region19: #{_expert_call.1} parent=1 // pred_check_branch
      %204 = sbr.rel (%p202) target = $region21
    $region20: #{_expert_call.1} parent=1 // pred_region
      %v205 = vld [vmem:[#allocation2] sm:$0xff]
      %v206 = vld [vmem:[#allocation2 + $0x8] sm:$0xff]
      %v207 = vpack.c.bf16 %v206, %v205
      %v209 = vunpack.c.l.b16 %v207
      %v210 = vunpack.c.h.b16 %v207
      %v211 = vpack.c.b16 %v209, %v209
      %v212 = vpack.c.b16 %v210, %v210
      %vm215 = vcmask 257024
      %216 = vst.msk [vmem:[#allocation3] sm:$0xf] %vm215, %v211
      %217 = vst.msk [vmem:[#allocation3 + $0x4] sm:$0xf] %vm215, %v212
    $region21: #{_expert_call.1} parent=1 // pred_fallthru
      _
    // Predicated region
    $region22: #{_expert_call.1} parent=1 // pred_check
      _
    $region23: #{_expert_call.1} parent=1 // pred_check_branch
      %219 = sbr.rel (0) target = $region25
    $region24: #{_expert_call.1} parent=1 // pred_region
      %s221 = ssub.s32 128, 128
      %222 = vsyncadd [#allocation4], %s221
      %s223 = sshll.u32 [#allocation3], 4
      %s224 = int_to_ptr.vmem [resolvable:$true] %s223
      %229 = dma.vmem_to_hbm [thread:$0]  %s224, 128, %s3, [#allocation4], 64, 64, 4
    $region25: #{_expert_call.1} parent=1 // pred_fallthru
      _
    // Predicated region
    $region26: #{_expert_call.1} parent=1 // pred_check
      _
    $region27: #{_expert_call.1} parent=1 // pred_check_branch
      %231 = sbr.rel (0) target = $region29
    $region28: #{_expert_call.1} parent=1 // pred_region
      %232 = dma.done [#allocation4], 128
    $region29: #{_expert_call.1} parent=1 // pred_fallthru
      _
    %233 = vsyncpa [#allocation4], 1

// kernel: _expert_call.1
$region0: #{_expert_call.1}
  #allocation0 [shape = 'u32[]', space=smem, size = 0x4, offset = 0x4, fixed_abs, tag = 'smem constant byte address 0x4 - core index']
  #allocation1 [shape = 'u32[144,128]{1,0:T(1,128)}', space=vmem, size = 0x12000, scoped, tag = 'internal scratch']
  #allocation2 [shape = 'f32[16,32]{1,0:T(8,128)}', space=vmem, size = 0x2000, scoped, tag = 'scratch operand']
  %s0 = inlined_call_operand.vmem [shape: bf16[16,32], index: 0, kind: input, shape index: {}]
  %s1 = inlined_call_operand.vmem [shape: bf16[32,128], index: 1, kind: input, shape index: {}]
  %s2 = inlined_call_operand.vmem [shape: bf16[64,32], index: 2, kind: input, shape index: {}]
  %s3 = inlined_call_operand.hbm [shape: bf16[16,32], index: 3, kind: output, shape index: {}]
  %s4 = sld [smem:[#allocation0]]
  $region30: #{_expert_call.1} parent=0
    _
  %s6 = ssub.s32 1, %s4
  %s7 = scalar_select 0, %s6, %s4
  $region1: #{_expert_call.1} parent=0
    #allocation3 [shape = 'u8[4096]{0}', space=vmem, size = 0x1000, scoped, tag = 'output window, operand 0, single buffered']
    #allocation4 [shape = 's32[1]{0}', space=sflag, size = 0x4, scoped, tag = 'scoped memory for _expert_call.1']
    %8 = vsyncpa [#allocation4], 0
    // Predicated region
    $region2: #{_expert_call.1} parent=1 // pred_check
      _
    $region3: #{_expert_call.1} parent=1 // pred_check_branch
      %10 = sbr.rel (0) target = $region5
    $region4: #{_expert_call.1} parent=1 // pred_region
      _
    $region5: #{_expert_call.1} parent=1 // pred_fallthru
      _
    // Predicated region
    $region6: #{_expert_call.1} parent=1 // pred_check
      _
    $region7: #{_expert_call.1} parent=1 // pred_check_branch
      %12 = sbr.rel (0) target = $region9
    $region8: #{_expert_call.1} parent=1 // pred_region
      _
    $region9: #{_expert_call.1} parent=1 // pred_fallthru
      _
    // Predicated region
    $region10: #{_expert_call.1} parent=1 // pred_check
      _
    $region11: #{_expert_call.1} parent=1 // pred_check_branch
      %14 = sbr.rel (0) target = $region13
    $region12: #{_expert_call.1} parent=1 // pred_region
      _
    $region13: #{_expert_call.1} parent=1 // pred_fallthru
      _
    %p16 = scmp.eq.s32.totalorder 0, 0
    // Predicated region
    $region14: #{_expert_call.1} parent=1 // pred_check
      %p17 = pneg %p16
    $region15: #{_expert_call.1} parent=1 // pred_check_branch
      %19 = sbr.rel (%p17) target = $region17
    $region16: #{_expert_call.1} parent=1 // pred_region
      %vm20 = vcmask 261120
      %21 = vst.msk [vmem:[#allocation2] sm:$0xff] %vm20, 0.0
      %22 = vst.msk [vmem:[#allocation2 + $0x8] sm:$0xff] %vm20, 0.0
    $region17: #{_expert_call.1} parent=1 // pred_fallthru
      _
    %v23 = vld [vmem:[%s0] sm:$0xf]
    %v24 = vld [vmem:[%s0 + $0x4] sm:$0xf]
    %v25 = vld [vmem:[%s1] sm:$0xf]
    %v26 = vld [vmem:[%s1 + $0x4] sm:$0xf]
    %v27 = vld [vmem:[%s1 + $0x8] sm:$0xf]
    %v28 = vld [vmem:[%s1 + $0xc] sm:$0xf]
    %v31 = vunpack.c.l.b16 %v23
    %v32 = vunpack.c.l.b16 %v24
    %v33 = vpack.c.b16 %v32, %v31
    %v38 = vunpack.c.l.b16 %v25
    %v39 = vunpack.c.l.b16 %v26
    %v40 = vunpack.c.l.b16 %v27
    %v41 = vunpack.c.l.b16 %v28
    %v42 = vpack.c.b16 %v39, %v38
    %v43 = vpack.c.b16 %v41, %v40
    %vm46 = vcmask 261120
    %v48 = vsel %vm46, %v33, 0
    %50 = vmatprep.subr.bf16.mxu0 0
    %51 = vmatpush1.bf16.msra.mxu0 0
    %52 = vmatprep.subr.bf16.mxu0 0
    %53 = vmatpush1.bf16.msra.mxu0 0
    %54 = vmatprep.subr.bf16.mxu0 0
    %55 = vmatpush1.bf16.msra.mxu0 0
    %56 = vmatprep.subr.bf16.mxu0 0
    %57 = vmatpush1.bf16.msra.mxu0 0
    %58 = vmatprep.subr.bf16.mxu0 0
    %59 = vmatpush1.bf16.msra.mxu0 0
    %60 = vmatprep.subr.bf16.mxu0 0
    %61 = vmatpush1.bf16.msra.mxu0 0
    %62 = vmatprep.subr.bf16.mxu0 0
    %63 = vmatpush1.bf16.msra.mxu0 %v43
    %64 = vmatprep.subr.bf16.mxu0 0
    %65 = vmatpush1.bf16.msra.mxu0 %v42
    %66 = vmatprep.subr.bf16.mxu0 0
    %67 = vmatpush2.bf16.msra.mxu0 0
    %68 = vmatprep.subr.bf16.mxu0 0
    %69 = vmatpush2.bf16.msra.mxu0 0
    %70 = vmatprep.subr.bf16.mxu0 0
    %71 = vmatpush2.bf16.msra.mxu0 0
    %72 = vmatprep.subr.bf16.mxu0 0
    %73 = vmatpush2.bf16.msra.mxu0 0
    %74 = vmatprep.subr.bf16.mxu0 0
    %75 = vmatpush2.bf16.msra.mxu0 0
    %76 = vmatprep.subr.bf16.mxu0 0
    %77 = vmatpush2.bf16.msra.mxu0 0
    %78 = vmatprep.subr.bf16.mxu0 0
    %79 = vmatpush2.bf16.msra.mxu0 0
    %80 = vmatprep.subr.bf16.mxu0 0
    %81 = vmatpush2.bf16.msra.mxu0 0
    %82 = vmatprep.mubr.bf16.mxu0 0
    %83 = vmatmul.mubr.bf16.gmra.mxu0 %v48
    %v84 = vpop.f32.mrf.mxu0
    %v85 = vadd.f32 0.0, %v84
    %v86 = vpop.f32.mrf.mxu0
    %v87 = vpop.f32.mrf.mxu0
    %v88 = vadd.f32 0.0, %v87
    %v89 = vpop.f32.mrf.mxu0
    %90 = vdwg.mxu0
    %v91 = vpack.c.bf16 %v88, %v85
    %v92 = vxor.u32 %v85, 2147483648
    %v93 = vxor.u32 %v88, 2147483648
    %v94 = vmul.f32 %v92, 1.442695
    %v95 = vpow.pop %v94
    %v96 = vmul.f32 %v93, 1.442695
    %v97 = vpow.pop %v96
    %v98 = vadd.f32 %v95, 1.0
    %v99 = vadd.f32 %v97, 1.0
    %v100 = vrcp.pop %v98
    %v101 = vmul.f32 1.0, %v100
    %v102 = vrcp.pop %v99
    %v103 = vmul.f32 1.0, %v102
    %v104 = vmul.f32 %v85, %v101
    %v105 = vmul.f32 %v88, %v103
    %v106 = vunpack.c.l.bf16 %v91
    %v107 = vunpack.c.h.bf16 %v91
    %110 = vrot.lane.b32.xlu0 %v106, 64
    %v111 = vpop.permute.xlu0 %110
    %112 = vrot.lane.b32.xlu0 %v107, 64
    %v113 = vpop.permute.xlu0 %112
    %v116 = vmul.f32 %v104, %v111
    %v117 = vmul.f32 %v105, %v113
    %v118 = vpack.c.bf16 %v117, %v116
    %v119 = vld [vmem:[#allocation2] sm:$0xff]
    %v120 = vld [vmem:[#allocation2 + $0x8] sm:$0xff]
    %v121 = vld [vmem:[%s2] sm:$0xf]
    %v122 = vld [vmem:[%s2 + $0x4] sm:$0xf]
    %v123 = vld [vmem:[%s2 + $0x8] sm:$0xf]
    %v124 = vld [vmem:[%s2 + $0xc] sm:$0xf]
    %v125 = vld [vmem:[%s2 + $0x10] sm:$0xf]
    %v126 = vld [vmem:[%s2 + $0x14] sm:$0xf]
    %v127 = vld [vmem:[%s2 + $0x18] sm:$0xf]
    %v128 = vld [vmem:[%s2 + $0x1c] sm:$0xf]
    %v137 = vunpack.c.l.b16 %v121
    %v138 = vunpack.c.l.b16 %v122
    %v139 = vunpack.c.l.b16 %v123
    %v140 = vunpack.c.l.b16 %v124
    %v141 = vunpack.c.l.b16 %v125
    %v142 = vunpack.c.l.b16 %v126
    %v143 = vunpack.c.l.b16 %v127
    %v144 = vunpack.c.l.b16 %v128
    %v145 = vpack.c.b16 %v138, %v137
    %v146 = vpack.c.b16 %v140, %v139
    %v147 = vpack.c.b16 %v142, %v141
    %v148 = vpack.c.b16 %v144, %v143
    %vm153 = vcmask 523264
    %v155 = vsel %vm153, %v118, 0
    %157 = vmatprep.subr.bf16.mxu0 0
    %158 = vmatpush1.bf16.msra.mxu0 0
    %159 = vmatprep.subr.bf16.mxu0 0
    %160 = vmatpush1.bf16.msra.mxu0 0
    %161 = vmatprep.subr.bf16.mxu0 0
    %162 = vmatpush1.bf16.msra.mxu0 0
    %163 = vmatprep.subr.bf16.mxu0 0
    %164 = vmatpush1.bf16.msra.mxu0 0
    %165 = vmatprep.subr.bf16.mxu0 0
    %166 = vmatpush1.bf16.msra.mxu0 %v148
    %167 = vmatprep.subr.bf16.mxu0 0
    %168 = vmatpush1.bf16.msra.mxu0 %v147
    %169 = vmatprep.subr.bf16.mxu0 0
    %170 = vmatpush1.bf16.msra.mxu0 %v146
    %171 = vmatprep.subr.bf16.mxu0 0
    %172 = vmatpush1.bf16.msra.mxu0 %v145
    %173 = vmatprep.subr.bf16.mxu0 0
    %174 = vmatpush2.bf16.msra.mxu0 0
    %175 = vmatprep.subr.bf16.mxu0 0
    %176 = vmatpush2.bf16.msra.mxu0 0
    %177 = vmatprep.subr.bf16.mxu0 0
    %178 = vmatpush2.bf16.msra.mxu0 0
    %179 = vmatprep.subr.bf16.mxu0 0
    %180 = vmatpush2.bf16.msra.mxu0 0
    %181 = vmatprep.subr.bf16.mxu0 0
    %182 = vmatpush2.bf16.msra.mxu0 0
    %183 = vmatprep.subr.bf16.mxu0 0
    %184 = vmatpush2.bf16.msra.mxu0 0
    %185 = vmatprep.subr.bf16.mxu0 0
    %186 = vmatpush2.bf16.msra.mxu0 0
    %187 = vmatprep.subr.bf16.mxu0 0
    %188 = vmatpush2.bf16.msra.mxu0 0
    %189 = vmatprep.mubr.bf16.mxu0 0
    %190 = vmatmul.mubr.bf16.gmra.mxu0 %v155
    %v191 = vpop.f32.mrf.mxu0
    %v192 = vadd.f32 0.0, %v191
    %v193 = vpop.f32.mrf.mxu0
    %v194 = vpop.f32.mrf.mxu0
    %v195 = vadd.f32 0.0, %v194
    %v196 = vpop.f32.mrf.mxu0
    %197 = vdwg.mxu0
    %v198 = vadd.f32 %v119, %v192
    %v199 = vadd.f32 %v120, %v195
    %200 = vst.msk [vmem:[#allocation2] sm:$0xff] %vm46, %v198
    %201 = vst.msk [vmem:[#allocation2 + $0x8] sm:$0xff] %vm46, %v199
    // Predicated region
    $region18: #{_expert_call.1} parent=1 // pred_check
      %p202 = pneg %p16
    $region19: #{_expert_call.1} parent=1 // pred_check_branch
      %204 = sbr.rel (%p202) target = $region21
    $region20: #{_expert_call.1} parent=1 // pred_region
      %v205 = vld [vmem:[#allocation2] sm:$0xff]
      %v206 = vld [vmem:[#allocation2 + $0x8] sm:$0xff]
      %v207 = vpack.c.bf16 %v206, %v205
      %v209 = vunpack.c.l.b16 %v207
      %v210 = vunpack.c.h.b16 %v207
      %v211 = vpack.c.b16 %v209, %v209
      %v212 = vpack.c.b16 %v210, %v210
      %vm215 = vcmask 257024
      %216 = vst.msk [vmem:[#allocation3] sm:$0xf] %vm215, %v211
      %217 = vst.msk [vmem:[#allocation3 + $0x4] sm:$0xf] %vm215, %v212
    $region21: #{_expert_call.1} parent=1 // pred_fallthru
      _
    // Predicated region
    $region22: #{_expert_call.1} parent=1 // pred_check
      _
    $region23: #{_expert_call.1} parent=1 // pred_check_branch
      %219 = sbr.rel (0) target = $region25
    $region24: #{_expert_call.1} parent=1 // pred_region
      %s221 = ssub.s32 128, 128
      %222 = vsyncadd [#allocation4], %s221
      %s223 = sshll.u32 [#allocation3], 4
      %s224 = int_to_ptr.vmem [resolvable:$true] %s223
      %229 = dma.vmem_to_hbm [thread:$0]  %s224, 128, %s3, [#allocation4], 64, 64, 4
    $region25: #{_expert_call.1} parent=1 // pred_fallthru
      _
    // Predicated region
    $region26: #{_expert_call.1} parent=1 // pred_check
      _
    $region27: #{_expert_call.1} parent=1 // pred_check_branch
      %231 = sbr.rel (0) target = $region29
    $region28: #{_expert_call.1} parent=1 // pred_region
      %232 = dma.done [#allocation4], 128
    $region29: #{_expert_call.1} parent=1 // pred_fallthru
      _
    %233 = vsyncpa [#allocation4], 1

</llo_original>
